<compile_context>
chip_gen: v6e
topology: v6e:2x2x1
jax: 0.10.0
libtpu: 0.0.40
codegen_flags: <defaults>
</compile_context>

<pallas_src>
import jax
import jax.numpy as jnp
from jax.experimental import pallas as pl
from jax.experimental.pallas import tpu as pltpu


def _round_up(a, b):
    return (a + b - 1) // b * b


def _exact_silu(v):
    # silu(v) = v * sigmoid(v) = v * 0.5 * (tanh(v/2) + 1)   -- one EUP op.
    return v * (0.5 * (jnp.tanh(0.5 * v) + 1.0))


# --------------------------------------------------------------------------
# Kernel 1: time-embedding MLP   t(N,E) -> Linear -> SiLU -> Linear -> (N,O)
# Single invocation (no grid): all operands are tiny and live whole in VMEM.
# --------------------------------------------------------------------------
def _time_mlp_kernel(t_ref, w1_ref, b1_ref, w2_ref, b2_ref, o_ref):
    h = jnp.dot(t_ref[...].astype(jnp.float32),
                w1_ref[...].astype(jnp.float32),
                preferred_element_type=jnp.float32) + b1_ref[...]
    h = _exact_silu(h)
    o_ref[...] = jnp.dot(h, w2_ref[...].astype(jnp.float32),
                         preferred_element_type=jnp.float32) + b2_ref[...]


def time_mlp_embed(t, w1, b1, w2, b2):
    N, _ = t.shape
    Hd = w1.shape[1]
    O = w2.shape[1]
    return pl.pallas_call(
        _time_mlp_kernel,
        out_shape=jax.ShapeDtypeStruct((N, O), jnp.float32),
    )(t, w1, b1.reshape(1, Hd).astype(jnp.float32),
      w2, b2.reshape(1, O).astype(jnp.float32))


# --------------------------------------------------------------------------
# Kernel 2: out = SiLU(x + t_emb), t_emb broadcast over H, W.
# x is presented as (N*C, H*W): sublanes = (n, c) rows, lanes = spatial.
# Single pass: x read once, output written once, both in x's native dtype.
# --------------------------------------------------------------------------
def _add_time_silu_kernel(x_ref, temb_ref, o_ref):
    v = x_ref[...].astype(jnp.float32) + temb_ref[...]     # (TR,1) lane-bcast
    o_ref[...] = _exact_silu(v).astype(o_ref.dtype)


def time_mlp_forward(x_nchw, t, params):
    """Forward pass of TimeMLP: SiLU(x + MLP(t)[:, :, None, None])."""
    N, C, H, W = x_nchw.shape
    O = params['w2'].shape[1]
    assert O == C, "time-MLP out_dim must equal the channel dim of x"

    temb = time_mlp_embed(t, params['w1'], params['b1'],
                          params['w2'], params['b2'])      # (N, C) f32

    R, HW = N * C, H * W
    x2d = x_nchw.reshape(R, HW)          # contiguous NCHW view, free reshape
    temb_col = temb.reshape(R, 1)        # per-(n, c) scalar, f32

    # Sublane granularity follows the input dtype's packing.
    sub = {4: 8, 2: 16, 1: 32}.get(jnp.dtype(x2d.dtype).itemsize, 8)
    TR = min(_round_up(R, sub), 512)                 # sublane tile
    TC = min(_round_up(HW, 128), 2048)               # lane tile (>=128-dense)
    grid = (pl.cdiv(R, TR), pl.cdiv(HW, TC))         # ragged edges masked

    out2d = pl.pallas_call(
        _add_time_silu_kernel,
        out_shape=jax.ShapeDtypeStruct((R, HW), x2d.dtype),
        grid=grid,
        in_specs=[
            pl.BlockSpec((TR, TC), lambda i, j: (i, j)),
            pl.BlockSpec((TR, 1), lambda i, j: (i, 0)),
        ],
        out_specs=pl.BlockSpec((TR, TC), lambda i, j: (i, j)),
        compiler_params=pltpu.CompilerParams(
            dimension_semantics=("parallel", "parallel"),
            vmem_limit_bytes=32 << 20),
    )(x2d, temb_col)

    return out2d.reshape(N, C, H, W)


# --------------------------------------------------------------------------
# Deterministic parameter init (matches nn.Linear shapes, stored as (in, out))
# --------------------------------------------------------------------------
def init_params(key, embedding_dim, hidden_dim, out_dim):
    k1, k2, k3, k4 = jax.random.split(key, 4)

    def u(k, shape, fan_in):
        bound = 1.0 / (fan_in ** 0.5)
        return jax.random.uniform(k, shape, jnp.float32, -bound, bound)

    return dict(
        w1=u(k1, (embedding_dim, hidden_dim), embedding_dim),
        b1=u(k2, (hidden_dim,), embedding_dim),
        w2=u(k3, (hidden_dim, out_dim), hidden_dim),
        b2=u(k4, (out_dim,), hidden_dim),
    )


# --------------------------------------------------------------------------
# Pure-JAX reference (same math as the PyTorch module)
# --------------------------------------------------------------------------
def reference_forward(x, t, p):
    h = jax.nn.silu(t @ p['w1'] + p['b1'])
    temb = h @ p['w2'] + p['b2']
    return jax.nn.silu(x + temb[:, :, None, None])


if __name__ == "__main__":
    key = jax.random.PRNGKey(0)
    kx, kt, kp = jax.random.split(key, 3)
    # batch=2, embedding_dim=8, hidden_dim=32, out_dim = x channels = 4,
    # spatial 16x16 (out_dim must equal C for the broadcast add).
    N, E, Hd, C, H, W = 2, 8, 32, 4, 16, 16

    x = jax.random.normal(kx, (N, C, H, W), jnp.float32)
    t = jax.random.normal(kt, (N, E), jnp.float32)
    params = init_params(kp, E, Hd, C)

    out = jax.block_until_ready(time_mlp_forward(x, t, params))
    assert out.shape == (N, C, H, W), out.shape

    ref = reference_forward(x, t, params)
    err = float(jnp.max(jnp.abs(out - ref)))
    assert jnp.allclose(out, ref, rtol=1e-4, atol=1e-4), f"max abs err {err}"
    print("KERNEL_OK")
</pallas_src>

<mosaic_0001>
module attributes {stable_mosaic.version = 11 : i64} {
  func.func @_time_mlp_kernel(%arg0: memref<2x8xf32, #tpu.memory_space<vmem>>, %arg1: memref<8x32xf32, #tpu.memory_space<vmem>>, %arg2: memref<1x32xf32, #tpu.memory_space<vmem>>, %arg3: memref<32x4xf32, #tpu.memory_space<vmem>>, %arg4: memref<1x4xf32, #tpu.memory_space<vmem>>, %arg5: memref<2x4xf32, #tpu.memory_space<vmem>>) attributes {dimension_semantics = [], scalar_prefetch = 0 : i64, scratch_operands = 0 : i64, tpu.core_type = #tpu.core_type<tc>} {
    %c0 = arith.constant 0 : index
    %c0_0 = arith.constant 0 : index
    %0 = vector.load %arg0[%c0, %c0_0] : memref<2x8xf32, #tpu.memory_space<vmem>>, vector<2x8xf32>
    %c0_1 = arith.constant 0 : index
    %c0_2 = arith.constant 0 : index
    %1 = vector.load %arg1[%c0_1, %c0_2] : memref<8x32xf32, #tpu.memory_space<vmem>>, vector<8x32xf32>
    %cst = arith.constant dense<0.000000e+00> : vector<2x32xf32>
    %2 = tpu.matmul %0, %1, %cst {dimension_numbers = #tpu.dot_dimension_numbers<[1], [0], [0], [1], [0, 0, 1, 1], [], []>} : vector<2x8xf32>, vector<8x32xf32>, vector<2x32xf32> -> vector<2x32xf32>
    %c0_3 = arith.constant 0 : index
    %c0_4 = arith.constant 0 : index
    %3 = vector.load %arg2[%c0_3, %c0_4] : memref<1x32xf32, #tpu.memory_space<vmem>>, vector<1x32xf32>
    %4 = vector.broadcast %3 : vector<1x32xf32> to vector<2x32xf32>
    %5 = arith.addf %2, %4 : vector<2x32xf32>
    %cst_5 = arith.constant 5.000000e-01 : f32
    %6 = vector.broadcast %cst_5 : f32 to vector<2x32xf32>
    %7 = arith.mulf %6, %5 : vector<2x32xf32>
    %8 = math.tanh %7 : vector<2x32xf32>
    %cst_6 = arith.constant 1.000000e+00 : f32
    %9 = vector.broadcast %cst_6 : f32 to vector<2x32xf32>
    %10 = arith.addf %8, %9 : vector<2x32xf32>
    %cst_7 = arith.constant 5.000000e-01 : f32
    %11 = vector.broadcast %cst_7 : f32 to vector<2x32xf32>
    %12 = arith.mulf %11, %10 : vector<2x32xf32>
    %13 = arith.mulf %5, %12 : vector<2x32xf32>
    %c0_8 = arith.constant 0 : index
    %c0_9 = arith.constant 0 : index
    %14 = vector.load %arg3[%c0_8, %c0_9] : memref<32x4xf32, #tpu.memory_space<vmem>>, vector<32x4xf32>
    %cst_10 = arith.constant dense<0.000000e+00> : vector<2x4xf32>
    %15 = tpu.matmul %13, %14, %cst_10 {dimension_numbers = #tpu.dot_dimension_numbers<[1], [0], [0], [1], [0, 0, 1, 1], [], []>} : vector<2x32xf32>, vector<32x4xf32>, vector<2x4xf32> -> vector<2x4xf32>
    %c0_11 = arith.constant 0 : index
    %c0_12 = arith.constant 0 : index
    %16 = vector.load %arg4[%c0_11, %c0_12] : memref<1x4xf32, #tpu.memory_space<vmem>>, vector<1x4xf32>
    %17 = vector.broadcast %16 : vector<1x4xf32> to vector<2x4xf32>
    %18 = arith.addf %15, %17 : vector<2x4xf32>
    %c0_13 = arith.constant 0 : index
    %c0_14 = arith.constant 0 : index
    %19 = vector.load %arg5[%c0_13, %c0_14] : memref<2x4xf32, #tpu.memory_space<vmem>>, vector<2x4xf32>
    tpu.vector_store %arg5[%c0_13, %c0_14], %18 {strides = array<i32>} : memref<2x4xf32, #tpu.memory_space<vmem>>, vector<2x4xf32>,
    return
  }
}

</mosaic_0001>

<llo_original>
// kernel: tpu_custom_call.1
$region0: #{tpu_custom_call.1}
  #allocation0 [shape = 'u32[]', space=smem, size = 0x4, offset = 0x4, fixed_abs, tag = 'smem constant byte address 0x4 - core index']
  #allocation1 [shape = 'u32[144,128]{1,0:T(1,128)}', space=vmem, size = 0x12000, scoped, tag = 'internal scratch']
  %s0 = inlined_call_operand.vmem [shape: f32[2,8], index: 0, kind: input, shape index: {}]
  %s1 = inlined_call_operand.vmem [shape: f32[8,32], index: 1, kind: input, shape index: {}]
  %s2 = inlined_call_operand.vmem [shape: f32[1,32], index: 2, kind: input, shape index: {}]
  %s3 = inlined_call_operand.vmem [shape: f32[32,4], index: 3, kind: input, shape index: {}]
  %s4 = inlined_call_operand.vmem [shape: f32[1,4], index: 4, kind: input, shape index: {}]
  %s5 = inlined_call_operand.hbm [shape: f32[2,4], index: 5, kind: output, shape index: {}]
  %s6 = sld [smem:[#allocation0]]
  $region30: #{tpu_custom_call.1} parent=0
    _
  %s8 = ssub.s32 1, %s6
  %s9 = scalar_select 0, %s8, %s6
  $region1: #{tpu_custom_call.1} parent=0
    #allocation2 [shape = 'u8[1024]{0}', space=vmem, size = 0x400, scoped, tag = 'output window, operand 0, single buffered']
    #allocation3 [shape = 's32[1]{0}', space=sflag, size = 0x4, scoped, tag = 'scoped memory for tpu_custom_call.1']
    %10 = vsyncpa [#allocation3], 0
    // Predicated region
    $region2: #{tpu_custom_call.1} parent=1 // pred_check
      _
    $region3: #{tpu_custom_call.1} parent=1 // pred_check_branch
      %12 = sbr.rel (0) target = $region5
    $region4: #{tpu_custom_call.1} parent=1 // pred_region
      _
    $region5: #{tpu_custom_call.1} parent=1 // pred_fallthru
      _
    // Predicated region
    $region6: #{tpu_custom_call.1} parent=1 // pred_check
      _
    $region7: #{tpu_custom_call.1} parent=1 // pred_check_branch
      %14 = sbr.rel (0) target = $region9
    $region8: #{tpu_custom_call.1} parent=1 // pred_region
      _
    $region9: #{tpu_custom_call.1} parent=1 // pred_fallthru
      _
    // Predicated region
    $region10: #{tpu_custom_call.1} parent=1 // pred_check
      _
    $region11: #{tpu_custom_call.1} parent=1 // pred_check_branch
      %16 = sbr.rel (0) target = $region13
    $region12: #{tpu_custom_call.1} parent=1 // pred_region
      _
    $region13: #{tpu_custom_call.1} parent=1 // pred_fallthru
      _
    // Predicated region
    $region14: #{tpu_custom_call.1} parent=1 // pred_check
      _
    $region15: #{tpu_custom_call.1} parent=1 // pred_check_branch
      %18 = sbr.rel (0) target = $region17
    $region16: #{tpu_custom_call.1} parent=1 // pred_region
      _
    $region17: #{tpu_custom_call.1} parent=1 // pred_fallthru
      _
    // Predicated region
    $region18: #{tpu_custom_call.1} parent=1 // pred_check
      _
    $region19: #{tpu_custom_call.1} parent=1 // pred_check_branch
      %20 = sbr.rel (0) target = $region21
    $region20: #{tpu_custom_call.1} parent=1 // pred_region
      _
    $region21: #{tpu_custom_call.1} parent=1 // pred_fallthru
      _
    %v21 = vld [vmem:[%s0] sm:$0x3]
    %v22 = vld [vmem:[%s1] sm:$0xff]
    %v23 = vld [vmem:[%s2] sm:$0x1]
    %v25 = vlaneseq
    %v26 = vshrl.u32 %v25, 7
    %v27 = vsub.s32 0, %v26
    %v28 = vrot.slane %v23, %v27
    %vm30 = vcmask 64512
    %v32 = vsel %vm30, %v21, 0
    %34 = vmatprep.subr.mxu0 0.0
    %35 = vmatpush1.msra.mxu0 0.0
    %36 = vmatprep.subr.mxu0 0.0
    %37 = vmatpush1.msra.mxu0 0.0
    %38 = vmatprep.subr.mxu0 0.0
    %39 = vmatpush1.msra.mxu0 0.0
    %40 = vmatprep.subr.mxu0 0.0
    %41 = vmatpush1.msra.mxu0 0.0
    %42 = vmatprep.subr.mxu0 0.0
    %43 = vmatpush1.msra.mxu0 0.0
    %44 = vmatprep.subr.mxu0 0.0
    %45 = vmatpush1.msra.mxu0 0.0
    %46 = vmatprep.subr.mxu0 0.0
    %47 = vmatpush1.msra.mxu0 0.0
    %48 = vmatprep.subr.mxu0 0.0
    %49 = vmatpush1.msra.mxu0 0.0
    %50 = vmatprep.subr.mxu0 0.0
    %51 = vmatpush1.msra.mxu0 0.0
    %52 = vmatprep.subr.mxu0 0.0
    %53 = vmatpush1.msra.mxu0 0.0
    %54 = vmatprep.subr.mxu0 0.0
    %55 = vmatpush1.msra.mxu0 0.0
    %56 = vmatprep.subr.mxu0 0.0
    %57 = vmatpush1.msra.mxu0 0.0
    %58 = vmatprep.subr.mxu0 0.0
    %59 = vmatpush1.msra.mxu0 0.0
    %60 = vmatprep.subr.mxu0 0.0
    %61 = vmatpush1.msra.mxu0 0.0
    %62 = vmatprep.subr.mxu0 0.0
    %63 = vmatpush1.msra.mxu0 0.0
    %64 = vmatprep.subr.mxu0 0.0
    %65 = vmatpush1.msra.mxu0 %v22
    %66 = vmatprep.subr.mxu0 0.0
    %67 = vmatpush2.msra.mxu0 0.0
    %68 = vmatprep.subr.mxu0 0.0
    %69 = vmatpush2.msra.mxu0 0.0
    %70 = vmatprep.subr.mxu0 0.0
    %71 = vmatpush2.msra.mxu0 0.0
    %72 = vmatprep.subr.mxu0 0.0
    %73 = vmatpush2.msra.mxu0 0.0
    %74 = vmatprep.subr.mxu0 0.0
    %75 = vmatpush2.msra.mxu0 0.0
    %76 = vmatprep.subr.mxu0 0.0
    %77 = vmatpush2.msra.mxu0 0.0
    %78 = vmatprep.subr.mxu0 0.0
    %79 = vmatpush2.msra.mxu0 0.0
    %80 = vmatprep.subr.mxu0 0.0
    %81 = vmatpush2.msra.mxu0 0.0
    %82 = vmatprep.subr.mxu0 0.0
    %83 = vmatpush2.msra.mxu0 0.0
    %84 = vmatprep.subr.mxu0 0.0
    %85 = vmatpush2.msra.mxu0 0.0
    %86 = vmatprep.subr.mxu0 0.0
    %87 = vmatpush2.msra.mxu0 0.0
    %88 = vmatprep.subr.mxu0 0.0
    %89 = vmatpush2.msra.mxu0 0.0
    %90 = vmatprep.subr.mxu0 0.0
    %91 = vmatpush2.msra.mxu0 0.0
    %92 = vmatprep.subr.mxu0 0.0
    %93 = vmatpush2.msra.mxu0 0.0
    %94 = vmatprep.subr.mxu0 0.0
    %95 = vmatpush2.msra.mxu0 0.0
    %96 = vmatprep.subr.mxu0 0.0
    %97 = vmatpush2.msra.mxu0 0.0
    %98 = vmatprep.mubr.f32.mxu0 0.0
    %99 = vmatmul.mubr.f32.gmra.mxu0 %v32
    %v100 = vpop.f32.mrf.mxu0
    %v101 = vadd.f32 %v28, %v100
    %v102 = vpop.f32.mrf.mxu0
    %103 = vdwg.mxu0
    %v104 = vmul.f32 %v101, 0.5
    %v105 = vtanh.pop %v104
    %v106 = vadd.f32 %v105, 1.0
    %v107 = vmul.f32 %v106, 0.5
    %v108 = vmul.f32 %v101, %v107
    %v109 = vld [vmem:[%s3] sm:$0xff]
    %v110 = vld [vmem:[%s3 + $0x8] sm:$0xff]
    %v111 = vld [vmem:[%s3 + $0x10] sm:$0xff]
    %v112 = vld [vmem:[%s3 + $0x18] sm:$0xff]
    %v113 = vld [vmem:[%s4] sm:$0x1]
    %v115 = vlaneseq
    %v116 = vshrl.u32 %v115, 7
    %v117 = vsub.s32 0, %v116
    %v118 = vrot.slane %v113, %v117
    %vm120 = vcmask 261120
    %v122 = vsel %vm120, %v108, 0
    %124 = vmatprep.subr.mxu0 0.0
    %125 = vmatpush1.msra.mxu0 0.0
    %126 = vmatprep.subr.mxu0 0.0
    %127 = vmatpush1.msra.mxu0 0.0
    %128 = vmatprep.subr.mxu0 0.0
    %129 = vmatpush1.msra.mxu0 0.0
    %130 = vmatprep.subr.mxu0 0.0
    %131 = vmatpush1.msra.mxu0 0.0
    %132 = vmatprep.subr.mxu0 0.0
    %133 = vmatpush1.msra.mxu0 0.0
    %134 = vmatprep.subr.mxu0 0.0
    %135 = vmatpush1.msra.mxu0 0.0
    %136 = vmatprep.subr.mxu0 0.0
    %137 = vmatpush1.msra.mxu0 0.0
    %138 = vmatprep.subr.mxu0 0.0
    %139 = vmatpush1.msra.mxu0 0.0
    %140 = vmatprep.subr.mxu0 0.0
    %141 = vmatpush1.msra.mxu0 0.0
    %142 = vmatprep.subr.mxu0 0.0
    %143 = vmatpush1.msra.mxu0 0.0
    %144 = vmatprep.subr.mxu0 0.0
    %145 = vmatpush1.msra.mxu0 0.0
    %146 = vmatprep.subr.mxu0 0.0
    %147 = vmatpush1.msra.mxu0 0.0
    %148 = vmatprep.subr.mxu0 0.0
    %149 = vmatpush1.msra.mxu0 %v112
    %150 = vmatprep.subr.mxu0 0.0
    %151 = vmatpush1.msra.mxu0 %v111
    %152 = vmatprep.subr.mxu0 0.0
    %153 = vmatpush1.msra.mxu0 %v110
    %154 = vmatprep.subr.mxu0 0.0
    %155 = vmatpush1.msra.mxu0 %v109
    %156 = vmatprep.subr.mxu0 0.0
    %157 = vmatpush2.msra.mxu0 0.0
    %158 = vmatprep.subr.mxu0 0.0
    %159 = vmatpush2.msra.mxu0 0.0
    %160 = vmatprep.subr.mxu0 0.0
    %161 = vmatpush2.msra.mxu0 0.0
    %162 = vmatprep.subr.mxu0 0.0
    %163 = vmatpush2.msra.mxu0 0.0
    %164 = vmatprep.subr.mxu0 0.0
    %165 = vmatpush2.msra.mxu0 0.0
    %166 = vmatprep.subr.mxu0 0.0
    %167 = vmatpush2.msra.mxu0 0.0
    %168 = vmatprep.subr.mxu0 0.0
    %169 = vmatpush2.msra.mxu0 0.0
    %170 = vmatprep.subr.mxu0 0.0
    %171 = vmatpush2.msra.mxu0 0.0
    %172 = vmatprep.subr.mxu0 0.0
    %173 = vmatpush2.msra.mxu0 0.0
    %174 = vmatprep.subr.mxu0 0.0
    %175 = vmatpush2.msra.mxu0 0.0
    %176 = vmatprep.subr.mxu0 0.0
    %177 = vmatpush2.msra.mxu0 0.0
    %178 = vmatprep.subr.mxu0 0.0
    %179 = vmatpush2.msra.mxu0 0.0
    %180 = vmatprep.subr.mxu0 0.0
    %181 = vmatpush2.msra.mxu0 0.0
    %182 = vmatprep.subr.mxu0 0.0
    %183 = vmatpush2.msra.mxu0 0.0
    %184 = vmatprep.subr.mxu0 0.0
    %185 = vmatpush2.msra.mxu0 0.0
    %186 = vmatprep.subr.mxu0 0.0
    %187 = vmatpush2.msra.mxu0 0.0
    %188 = vmatprep.mubr.f32.mxu0 0.0
    %189 = vmatmul.mubr.f32.gmra.mxu0 %v122
    %v190 = vpop.f32.mrf.mxu0
    %v191 = vadd.f32 %v118, %v190
    %v192 = vpop.f32.mrf.mxu0
    %193 = vdwg.mxu0
    %vm194 = vcmask 25600
    %195 = vst.msk [vmem:[#allocation2] sm:$0x3] %vm194, %v191
    // Predicated region
    $region22: #{tpu_custom_call.1} parent=1 // pred_check
      _
    $region23: #{tpu_custom_call.1} parent=1 // pred_check_branch
      %197 = sbr.rel (0) target = $region25
    $region24: #{tpu_custom_call.1} parent=1 // pred_region
      %s199 = ssub.s32 32, 32
      %200 = vsyncadd [#allocation3], %s199
      %s202 = sshll.u32 [#allocation2], 4
      %s203 = int_to_ptr.vmem [resolvable:$true] %s202
      %205 = dma.vmem_to_hbm [thread:$0]  %s203, 32, %s5, [#allocation3]
    $region25: #{tpu_custom_call.1} parent=1 // pred_fallthru
      _
    // Predicated region
    $region26: #{tpu_custom_call.1} parent=1 // pred_check
      _
    $region27: #{tpu_custom_call.1} parent=1 // pred_check_branch
      %207 = sbr.rel (0) target = $region29
    $region28: #{tpu_custom_call.1} parent=1 // pred_region
      %208 = dma.done [#allocation3], 32
    $region29: #{tpu_custom_call.1} parent=1 // pred_fallthru
      _
    %209 = vsyncpa [#allocation3], 1

</llo_original>
